<compile_context>
chip_gen: v6e
topology: v6e:2x2x1
jax: 0.10.0
libtpu: 0.0.40
codegen_flags: <defaults>
</compile_context>

<pallas_src>
import math

import jax
import jax.numpy as jnp
from jax.experimental import pallas as pl
from jax.experimental.pallas import tpu as pltpu

HID = 100        # logical hidden width (as in the PyTorch module)
HID_PAD = 128    # padded hidden width used inside the kernel (full lanes)

# activation and its derivative expressed in terms of the *activated* value y.
# ReLU derivative at z==0 is taken as 0 ((y>0)), matching PyTorch's convention.
_ACTIVATIONS = {
    "Tanh": (jnp.tanh, lambda y: 1.0 - y * y),
    "ReLU": (lambda z: jnp.maximum(z, 0.0), lambda y: (y > 0.0).astype(y.dtype)),
    "Sigmoid": (jax.nn.sigmoid, lambda y: y * (1.0 - y)),
}


def _round_up(n, m):
    return ((n + m - 1) // m) * m


def make_hnn_kernel(activation="Tanh"):
    act, dact = _ACTIVATIONS[activation]

    def hnn_kernel(x_ref, w1_ref, b1_ref, w2_ref, b2_ref, w2t_ref, w3r_ref,
                   w1t_ref, w3c_ref, out_ref):
        cdt = w2_ref.dtype                      # MXU operand dtype (bf16 by default)

        # Layer 1 on the MXU (K = IN_PAD = 8): one narrow contraction instead of
        # per-column XLU lane-broadcasts that contend with MXU pushes for the
        # vector-extended slots.
        x = x_ref[...].astype(cdt)              # [TB, IN_PAD]
        z1 = jnp.dot(x, w1_ref[...], preferred_element_type=jnp.float32) + b1_ref[...]
        y = act(z1)                             # [TB, 128] f32

        # Layer 2: dense 128x128 MXU matmul, bf16 operands, f32 accumulation.
        z2 = jnp.dot(y.astype(cdt), w2_ref[...],
                     preferred_element_type=jnp.float32) + b2_ref[...]
        y1 = act(z2)                            # [TB, 128] f32

        # Fused analytic dH/dx (chain rule), reusing y / y1 already in vregs:
        #   dH/dx = w1 . diag(act'(z1)) . w2 . diag(act'(z2)) . w3
        g2 = dact(y1) * w3r_ref[...]                                    # [TB, 128]
        g1 = dact(y) * jnp.dot(g2.astype(cdt), w2t_ref[...],
                               preferred_element_type=jnp.float32)      # [TB, 128]

        # Single lane-merged output tile: lane 0 = H, lanes 1..d_in = dH/dx.
        # Both heads are narrow (N = OUT_PAD) MXU matmuls -> no XLU lane-reduce,
        # no concatenate, exactly one store + one writeback DMA per tile.
        out_ref[...] = (
            jnp.dot(y1.astype(cdt), w3c_ref[...], preferred_element_type=jnp.float32)
            + jnp.dot(g1.astype(cdt), w1t_ref[...], preferred_element_type=jnp.float32))

    return hnn_kernel


def prepare_params(w1, b1, w2, b2, w3, *, matmul_dtype=jnp.bfloat16):
    """Zero-pad hidden 100 -> 128, build MXU-friendly layouts, cast matmul weights.

    Layout: weights are [in_features, out_features] (transposed vs. PyTorch),
    biases are [1, out] rows (kept f32). w3 is provided both as a [1, 128] row
    (for the elementwise g2 = act'(y1)*w3) and folded into a [128, OUT_PAD]
    "head" column matrix; w1^T (shifted by one lane) is the other head so the
    kernel writes H and dH/dx with two narrow MXU matmuls into one output tile.
    Zero padding survives the bf16 cast exactly.
    """
    d_in = w1.shape[0]
    in_pad = max(8, _round_up(d_in, 8))
    out_pad = max(8, _round_up(d_in + 1, 8))
    hp = HID_PAD
    f32 = jnp.float32

    w1p = jnp.zeros((in_pad, hp), f32).at[:d_in, :HID].set(w1)
    b1p = jnp.zeros((1, hp), f32).at[:, :HID].set(b1.reshape(1, -1))
    w2p = jnp.zeros((hp, hp), f32).at[:HID, :HID].set(w2)
    b2p = jnp.zeros((1, hp), f32).at[:, :HID].set(b2.reshape(1, -1))
    w3row = jnp.zeros((1, hp), f32).at[:, :HID].set(w3.reshape(1, -1))

    # Merged-output head matrices: column 0 <- H, columns 1..d_in <- dH/dx.
    w3col = jnp.zeros((hp, out_pad), f32).at[:HID, 0].set(w3.reshape(-1))
    w1t_shift = jnp.zeros((hp, out_pad), f32).at[:, 1:1 + d_in].set(w1p.T[:, :d_in])

    return (w1p.astype(matmul_dtype), b1p, w2p.astype(matmul_dtype), b2p,
            w2p.T.astype(matmul_dtype), w3row,
            w1t_shift.astype(matmul_dtype), w3col.astype(matmul_dtype))


def hnn_forward_and_grad(x, params, *, activation="Tanh", block_b=2048):
    """Returns (H [B,1], dH/dx [B,d_in]) for a batch of states x [B, d_in]."""
    w1p, b1p, w2p, b2p, w2tp, w3row, w1tp, w3col = params
    B, d_in = x.shape
    in_pad = w1p.shape[0]
    out_pad = w3col.shape[1]

    # Zero-pad features to the MXU-friendly width (pad rows of w1 are zero).
    if d_in < in_pad:
        x = jnp.pad(x, ((0, 0), (0, in_pad - d_in)))

    bp8 = _round_up(B, 8)
    tb = max(8, min(_round_up(block_b, 8), bp8))        # batch tile (multiple of 8)
    # v7x has 2 TensorCores: make sure the "parallel" batch axis has >= 2 blocks
    # whenever there is enough work to split (costs one ~0.35us extra grid step
    # on single-TC parts, which is negligible).
    if bp8 // tb < 2 and bp8 >= 16:
        tb = _round_up((bp8 + 1) // 2, 8)
    grid = pl.cdiv(B, tb)   # ragged last block: OOB rows are dropped on writeback

    def const_spec(a):      # weights/biases: VMEM-resident, constant index_map
        # TODO(synk): pipeline_mode=pl.Buffered(1) would drop the redundant second
        # buffer for these constant blocks; left at the default for robustness.
        return pl.BlockSpec(a.shape, lambda i: (0, 0))

    # Rough per-tile VMEM budget: double-buffered lane-padded I/O blocks plus the
    # f32/bf16 [tb,128] intermediates (v7x has only 64 MiB physical VMEM).
    vmem_bytes = tb * 128 * 4 * 16 + (4 << 20)
    vmem_limit = int(min(max(vmem_bytes, 32 << 20), 48 << 20))

    out = pl.pallas_call(
        make_hnn_kernel(activation),
        out_shape=jax.ShapeDtypeStruct((B, out_pad), jnp.float32),
        grid_spec=pltpu.PrefetchScalarGridSpec(
            num_scalar_prefetch=0,
            grid=(grid,),
            in_specs=[
                pl.BlockSpec((tb, in_pad), lambda i: (i, 0)),   # x: blocked on batch
                const_spec(w1p), const_spec(b1p), const_spec(w2p), const_spec(b2p),
                const_spec(w2tp), const_spec(w3row), const_spec(w1tp), const_spec(w3col),
            ],
            out_specs=pl.BlockSpec((tb, out_pad), lambda i: (i, 0)),
        ),
        compiler_params=pltpu.CompilerParams(
            dimension_semantics=("parallel",),   # batch sharded across TCs on v7x
            vmem_limit_bytes=vmem_limit),
    )(x, w1p, b1p, w2p, b2p, w2tp, w3row, w1tp, w3col)

    return out[:, :1], out[:, 1:1 + d_in]


def hnn_forward(x, params, **kw):
    return hnn_forward_and_grad(x, params, **kw)[0]


def permutation_tensor(n):
    m = jnp.eye(n, dtype=jnp.float32)
    return jnp.concatenate([m[n // 2:], -m[: n // 2]], axis=0)


def hnn_time_derivative(x, params, M, **kw):
    h, dh = hnn_forward_and_grad(x, params, **kw)
    return dh @ M.T, h


def init_linear(key, fan_in, fan_out, bias=True):
    # Mirrors torch.nn.Linear default init: U(-1/sqrt(fan_in), 1/sqrt(fan_in)).
    kw, kb = jax.random.split(key)
    bound = 1.0 / math.sqrt(fan_in)
    w = jax.random.uniform(kw, (fan_in, fan_out), jnp.float32,
                           minval=-bound, maxval=bound)
    if bias:
        b = jax.random.uniform(kb, (1, fan_out), jnp.float32,
                               minval=-bound, maxval=bound)
        return w, b
    return w, None


def reference_forward(x, w1, b1, w2, b2, w3):
    y = jnp.tanh(x @ w1 + b1)
    y1 = jnp.tanh(y @ w2 + b2)
    return y1 @ w3


if __name__ == "__main__":
    key = jax.random.PRNGKey(0)
    k_x, k1, k2, k3 = jax.random.split(key, 4)

    B, D_IN = 8, 2  # pendulum HNN: x = (q, p)

    x = jax.random.normal(k_x, (B, D_IN), dtype=jnp.float32)
    w1, b1 = init_linear(k1, D_IN, HID, bias=True)
    w2, b2 = init_linear(k2, HID, HID, bias=True)
    w3, _ = init_linear(k3, HID, 1, bias=False)

    params = prepare_params(w1, b1, w2, b2, w3)
    M = permutation_tensor(D_IN)

    h, dh = hnn_forward_and_grad(x, params)
    h, dh = jax.block_until_ready((h, dh))
    dxdt = dh @ M.T  # symplectic gradient, as in time_derivative()

    ref_h = reference_forward(x, w1, b1, w2, b2, w3)
    ref_dh = jax.grad(lambda xx: reference_forward(xx, w1, b1, w2, b2, w3).sum())(x)
    ref_dxdt = ref_dh @ M.T

    assert h.shape == (B, 1) and dh.shape == (B, D_IN)
    # bf16 MXU operands (f32 accumulate) -> tolerances looser than pure f32.
    assert jnp.allclose(h, ref_h, atol=3e-2, rtol=3e-2)
    assert jnp.allclose(dh, ref_dh, atol=3e-2, rtol=3e-2)
    assert jnp.allclose(dxdt, ref_dxdt, atol=3e-2, rtol=3e-2)

    # Larger batch exercises the multi-block "parallel" grid path (2 blocks).
    B2 = 64
    x2 = jax.random.normal(jax.random.PRNGKey(1), (B2, D_IN), dtype=jnp.float32)
    h2, dh2 = jax.block_until_ready(hnn_forward_and_grad(x2, params))
    ref_h2 = reference_forward(x2, w1, b1, w2, b2, w3)
    ref_dh2 = jax.grad(lambda xx: reference_forward(xx, w1, b1, w2, b2, w3).sum())(x2)
    assert h2.shape == (B2, 1) and dh2.shape == (B2, D_IN)
    assert jnp.allclose(h2, ref_h2, atol=3e-2, rtol=3e-2)
    assert jnp.allclose(dh2, ref_dh2, atol=3e-2, rtol=3e-2)

    print("KERNEL_OK")
</pallas_src>

<mosaic_0001>
module attributes {stable_mosaic.version = 11 : i64} {
  func.func @hnn_kernel(%arg0: i32, %arg1: memref<8x8xf32, #tpu.memory_space<vmem>>, %arg2: memref<8x128xbf16, #tpu.memory_space<vmem>>, %arg3: memref<1x128xf32, #tpu.memory_space<vmem>>, %arg4: memref<128x128xbf16, #tpu.memory_space<vmem>>, %arg5: memref<1x128xf32, #tpu.memory_space<vmem>>, %arg6: memref<128x128xbf16, #tpu.memory_space<vmem>>, %arg7: memref<1x128xf32, #tpu.memory_space<vmem>>, %arg8: memref<128x8xbf16, #tpu.memory_space<vmem>>, %arg9: memref<128x8xbf16, #tpu.memory_space<vmem>>, %arg10: memref<8x8xf32, #tpu.memory_space<vmem>>) attributes {dimension_semantics = [#tpu.dimension_semantics<parallel>], iteration_bounds = array<i64: 1>, scalar_prefetch = 0 : i64, scratch_operands = 0 : i64, tpu.core_type = #tpu.core_type<tc>, window_params = [{transform_indices = @transform_0, window_bounds = array<i64: 8, 8>}, {pipeline_mode = #tpu.pipeline_mode<synchronous>, transform_indices = @transform_1, window_bounds = array<i64: 8, 128>}, {pipeline_mode = #tpu.pipeline_mode<synchronous>, transform_indices = @transform_2, window_bounds = array<i64: 1, 128>}, {pipeline_mode = #tpu.pipeline_mode<synchronous>, transform_indices = @transform_3, window_bounds = array<i64: 128, 128>}, {pipeline_mode = #tpu.pipeline_mode<synchronous>, transform_indices = @transform_4, window_bounds = array<i64: 1, 128>}, {pipeline_mode = #tpu.pipeline_mode<synchronous>, transform_indices = @transform_5, window_bounds = array<i64: 128, 128>}, {pipeline_mode = #tpu.pipeline_mode<synchronous>, transform_indices = @transform_6, window_bounds = array<i64: 1, 128>}, {pipeline_mode = #tpu.pipeline_mode<synchronous>, transform_indices = @transform_7, window_bounds = array<i64: 128, 8>}, {pipeline_mode = #tpu.pipeline_mode<synchronous>, transform_indices = @transform_8, window_bounds = array<i64: 128, 8>}, {transform_indices = @transform_9, window_bounds = array<i64: 8, 8>}]} {
    %c0 = arith.constant 0 : index
    %c0_0 = arith.constant 0 : index
    %0 = vector.load %arg1[%c0, %c0_0] : memref<8x8xf32, #tpu.memory_space<vmem>>, vector<8x8xf32>
    %1 = arith.truncf %0 : vector<8x8xf32> to vector<8x8xbf16>
    %c0_1 = arith.constant 0 : index
    %c0_2 = arith.constant 0 : index
    %2 = vector.load %arg2[%c0_1, %c0_2] : memref<8x128xbf16, #tpu.memory_space<vmem>>, vector<8x128xbf16>
    %cst = arith.constant dense<0.000000e+00> : vector<8x128xf32>
    %3 = tpu.matmul %1, %2, %cst {dimension_numbers = #tpu.dot_dimension_numbers<[1], [0], [0], [1], [0, 0, 1, 1], [], []>} : vector<8x8xbf16>, vector<8x128xbf16>, vector<8x128xf32> -> vector<8x128xf32>
    %c0_3 = arith.constant 0 : index
    %c0_4 = arith.constant 0 : index
    %4 = vector.load %arg3[%c0_3, %c0_4] : memref<1x128xf32, #tpu.memory_space<vmem>>, vector<1x128xf32>
    %5 = vector.broadcast %4 : vector<1x128xf32> to vector<8x128xf32>
    %6 = arith.addf %3, %5 : vector<8x128xf32>
    %7 = math.tanh %6 : vector<8x128xf32>
    %8 = arith.truncf %7 : vector<8x128xf32> to vector<8x128xbf16>
    %c0_5 = arith.constant 0 : index
    %c0_6 = arith.constant 0 : index
    %9 = vector.load %arg4[%c0_5, %c0_6] : memref<128x128xbf16, #tpu.memory_space<vmem>>, vector<128x128xbf16>
    %cst_7 = arith.constant dense<0.000000e+00> : vector<8x128xf32>
    %10 = tpu.matmul %8, %9, %cst_7 {dimension_numbers = #tpu.dot_dimension_numbers<[1], [0], [0], [1], [0, 0, 1, 1], [], []>} : vector<8x128xbf16>, vector<128x128xbf16>, vector<8x128xf32> -> vector<8x128xf32>
    %c0_8 = arith.constant 0 : index
    %c0_9 = arith.constant 0 : index
    %11 = vector.load %arg5[%c0_8, %c0_9] : memref<1x128xf32, #tpu.memory_space<vmem>>, vector<1x128xf32>
    %12 = vector.broadcast %11 : vector<1x128xf32> to vector<8x128xf32>
    %13 = arith.addf %10, %12 : vector<8x128xf32>
    %14 = math.tanh %13 : vector<8x128xf32>
    %15 = arith.mulf %14, %14 : vector<8x128xf32>
    %cst_10 = arith.constant 1.000000e+00 : f32
    %16 = vector.broadcast %cst_10 : f32 to vector<8x128xf32>
    %17 = arith.subf %16, %15 : vector<8x128xf32>
    %c0_11 = arith.constant 0 : index
    %c0_12 = arith.constant 0 : index
    %18 = vector.load %arg7[%c0_11, %c0_12] : memref<1x128xf32, #tpu.memory_space<vmem>>, vector<1x128xf32>
    %19 = vector.broadcast %18 : vector<1x128xf32> to vector<8x128xf32>
    %20 = arith.mulf %17, %19 : vector<8x128xf32>
    %21 = arith.mulf %7, %7 : vector<8x128xf32>
    %cst_13 = arith.constant 1.000000e+00 : f32
    %22 = vector.broadcast %cst_13 : f32 to vector<8x128xf32>
    %23 = arith.subf %22, %21 : vector<8x128xf32>
    %24 = arith.truncf %20 : vector<8x128xf32> to vector<8x128xbf16>
    %c0_14 = arith.constant 0 : index
    %c0_15 = arith.constant 0 : index
    %25 = vector.load %arg6[%c0_14, %c0_15] : memref<128x128xbf16, #tpu.memory_space<vmem>>, vector<128x128xbf16>
    %cst_16 = arith.constant dense<0.000000e+00> : vector<8x128xf32>
    %26 = tpu.matmul %24, %25, %cst_16 {dimension_numbers = #tpu.dot_dimension_numbers<[1], [0], [0], [1], [0, 0, 1, 1], [], []>} : vector<8x128xbf16>, vector<128x128xbf16>, vector<8x128xf32> -> vector<8x128xf32>
    %27 = arith.mulf %23, %26 : vector<8x128xf32>
    %28 = arith.truncf %14 : vector<8x128xf32> to vector<8x128xbf16>
    %c0_17 = arith.constant 0 : index
    %c0_18 = arith.constant 0 : index
    %29 = vector.load %arg9[%c0_17, %c0_18] : memref<128x8xbf16, #tpu.memory_space<vmem>>, vector<128x8xbf16>
    %cst_19 = arith.constant dense<0.000000e+00> : vector<8x8xf32>
    %30 = tpu.matmul %28, %29, %cst_19 {dimension_numbers = #tpu.dot_dimension_numbers<[1], [0], [0], [1], [0, 0, 1, 1], [], []>} : vector<8x128xbf16>, vector<128x8xbf16>, vector<8x8xf32> -> vector<8x8xf32>
    %31 = arith.truncf %27 : vector<8x128xf32> to vector<8x128xbf16>
    %c0_20 = arith.constant 0 : index
    %c0_21 = arith.constant 0 : index
    %32 = vector.load %arg8[%c0_20, %c0_21] : memref<128x8xbf16, #tpu.memory_space<vmem>>, vector<128x8xbf16>
    %cst_22 = arith.constant dense<0.000000e+00> : vector<8x8xf32>
    %33 = tpu.matmul %31, %32, %cst_22 {dimension_numbers = #tpu.dot_dimension_numbers<[1], [0], [0], [1], [0, 0, 1, 1], [], []>} : vector<8x128xbf16>, vector<128x8xbf16>, vector<8x8xf32> -> vector<8x8xf32>
    %34 = arith.addf %30, %33 : vector<8x8xf32>
    %c0_23 = arith.constant 0 : index
    %c0_24 = arith.constant 0 : index
    %35 = vector.load %arg10[%c0_23, %c0_24] : memref<8x8xf32, #tpu.memory_space<vmem>>, vector<8x8xf32>
    tpu.vector_store %arg10[%c0_23, %c0_24], %34 {strides = array<i32>} : memref<8x8xf32, #tpu.memory_space<vmem>>, vector<8x8xf32>,
    return
  }
  func.func @transform_0(%arg0: i32) -> (i32, i32) {
    %c0_i32 = arith.constant 0 : i32
    %c0_i32_0 = arith.constant 0 : i32
    return %arg0, %c0_i32 : i32, i32
  }
  func.func @transform_1(%arg0: i32) -> (i32, i32) {
    %c0_i32 = arith.constant 0 : i32
    %c0_i32_0 = arith.constant 0 : i32
    %c0_i32_1 = arith.constant 0 : i32
    return %c0_i32, %c0_i32_0 : i32, i32
  }
  func.func @transform_2(%arg0: i32) -> (i32, i32) {
    %c0_i32 = arith.constant 0 : i32
    %c0_i32_0 = arith.constant 0 : i32
    %c0_i32_1 = arith.constant 0 : i32
    return %c0_i32, %c0_i32_0 : i32, i32
  }
  func.func @transform_3(%arg0: i32) -> (i32, i32) {
    %c0_i32 = arith.constant 0 : i32
    %c0_i32_0 = arith.constant 0 : i32
    %c0_i32_1 = arith.constant 0 : i32
    return %c0_i32, %c0_i32_0 : i32, i32
  }
  func.func @transform_4(%arg0: i32) -> (i32, i32) {
    %c0_i32 = arith.constant 0 : i32
    %c0_i32_0 = arith.constant 0 : i32
    %c0_i32_1 = arith.constant 0 : i32
    return %c0_i32, %c0_i32_0 : i32, i32
  }
  func.func @transform_5(%arg0: i32) -> (i32, i32) {
    %c0_i32 = arith.constant 0 : i32
    %c0_i32_0 = arith.constant 0 : i32
    %c0_i32_1 = arith.constant 0 : i32
    return %c0_i32, %c0_i32_0 : i32, i32
  }
  func.func @transform_6(%arg0: i32) -> (i32, i32) {
    %c0_i32 = arith.constant 0 : i32
    %c0_i32_0 = arith.constant 0 : i32
    %c0_i32_1 = arith.constant 0 : i32
    return %c0_i32, %c0_i32_0 : i32, i32
  }
  func.func @transform_7(%arg0: i32) -> (i32, i32) {
    %c0_i32 = arith.constant 0 : i32
    %c0_i32_0 = arith.constant 0 : i32
    %c0_i32_1 = arith.constant 0 : i32
    return %c0_i32, %c0_i32_0 : i32, i32
  }
  func.func @transform_8(%arg0: i32) -> (i32, i32) {
    %c0_i32 = arith.constant 0 : i32
    %c0_i32_0 = arith.constant 0 : i32
    %c0_i32_1 = arith.constant 0 : i32
    return %c0_i32, %c0_i32_0 : i32, i32
  }
  func.func @transform_9(%arg0: i32) -> (i32, i32) {
    %c0_i32 = arith.constant 0 : i32
    %c0_i32_0 = arith.constant 0 : i32
    return %arg0, %c0_i32 : i32, i32
  }
}

</mosaic_0001>

<llo_original>
// kernel: tpu_custom_call.1
$region0: #{tpu_custom_call.1}
  #allocation0 [shape = 'u32[]', space=smem, size = 0x4, offset = 0x4, fixed_abs, tag = 'smem constant byte address 0x4 - core index']
  #allocation1 [shape = 'u32[144,128]{1,0:T(1,128)}', space=vmem, size = 0x12000, scoped, tag = 'internal scratch']
  %s0 = inlined_call_operand.vmem [shape: f32[8,8], index: 0, kind: input, shape index: {}]
  %s1 = inlined_call_operand.hbm [shape: bf16[8,128], index: 1, kind: input, shape index: {}]
  %s2 = inlined_call_operand.vmem [shape: f32[1,128], index: 2, kind: input, shape index: {}]
  %s3 = inlined_call_operand.vmem [shape: bf16[128,128], index: 3, kind: input, shape index: {}]
  %s4 = inlined_call_operand.hbm [shape: f32[1,128], index: 4, kind: input, shape index: {}]
  %s5 = inlined_call_operand.vmem [shape: bf16[128,128], index: 5, kind: input, shape index: {}]
  %s6 = inlined_call_operand.vmem [shape: f32[1,128], index: 6, kind: input, shape index: {}]
  %s7 = inlined_call_operand.vmem [shape: bf16[128,8], index: 7, kind: input, shape index: {}]
  %s8 = inlined_call_operand.vmem [shape: bf16[128,8], index: 8, kind: input, shape index: {}]
  %s9 = inlined_call_operand.hbm [shape: f32[8,8], index: 9, kind: output, shape index: {}]
  %s10 = sld [smem:[#allocation0]]
  $region54: #{tpu_custom_call.1} parent=0
    _
  %s12 = ssub.s32 1, %s10
  %s13 = scalar_select 0, %s12, %s10
  $region1: #{tpu_custom_call.1} parent=0
    #allocation2 [shape = 'u8[2048]{0}', space=vmem, size = 0x800, scoped, tag = 'input window, operand 1, single buffered']
    #allocation3 [shape = 's32[1]{0}', space=sflag, size = 0x4, scoped, tag = 'scoped memory for tpu_custom_call.1']
    #allocation4 [shape = 's32[1]{0}', space=sflag, size = 0x4, scoped, tag = 'scoped memory for tpu_custom_call.1']
    #allocation5 [shape = 'u8[512]{0}', space=vmem, size = 0x400, scoped, tag = 'input window, operand 4, single buffered']
    #allocation6 [shape = 's32[1]{0}', space=sflag, size = 0x4, scoped, tag = 'scoped memory for tpu_custom_call.1']
    #allocation7 [shape = 'u8[4096]{0}', space=vmem, size = 0x1000, scoped, tag = 'output window, operand 0, single buffered']
    %14 = vsyncpa [#allocation3], 0
    %15 = vsyncpa [#allocation6], 0
    %16 = vsyncpa [#allocation4], 0
    // Predicated region
    $region2: #{tpu_custom_call.1} parent=1 // pred_check
      _
    $region3: #{tpu_custom_call.1} parent=1 // pred_check_branch
      %18 = sbr.rel (0) target = $region5
    $region4: #{tpu_custom_call.1} parent=1 // pred_region
      _
    $region5: #{tpu_custom_call.1} parent=1 // pred_fallthru
      _
    // Predicated region
    $region6: #{tpu_custom_call.1} parent=1 // pred_check
      _
    $region7: #{tpu_custom_call.1} parent=1 // pred_check_branch
      %20 = sbr.rel (0) target = $region9
    $region8: #{tpu_custom_call.1} parent=1 // pred_region
      %s22 = ssub.s32 64, 64
      %23 = vsyncadd [#allocation3], %s22
      %s25 = sshll.u32 [#allocation2], 4
      %s26 = int_to_ptr.vmem [resolvable:$true] %s25
      %28 = dma.hbm_to_vmem [thread:$0]  %s1, 64, %s26, [#allocation3]
    $region9: #{tpu_custom_call.1} parent=1 // pred_fallthru
      _
    // Predicated region
    $region10: #{tpu_custom_call.1} parent=1 // pred_check
      _
    $region11: #{tpu_custom_call.1} parent=1 // pred_check_branch
      %30 = sbr.rel (0) target = $region13
    $region12: #{tpu_custom_call.1} parent=1 // pred_region
      _
    $region13: #{tpu_custom_call.1} parent=1 // pred_fallthru
      _
    // Predicated region
    $region14: #{tpu_custom_call.1} parent=1 // pred_check
      _
    $region15: #{tpu_custom_call.1} parent=1 // pred_check_branch
      %32 = sbr.rel (0) target = $region17
    $region16: #{tpu_custom_call.1} parent=1 // pred_region
      _
    $region17: #{tpu_custom_call.1} parent=1 // pred_fallthru
      _
    // Predicated region
    $region18: #{tpu_custom_call.1} parent=1 // pred_check
      _
    $region19: #{tpu_custom_call.1} parent=1 // pred_check_branch
      %34 = sbr.rel (0) target = $region21
    $region20: #{tpu_custom_call.1} parent=1 // pred_region
      %s36 = ssub.s32 16, 16
      %37 = vsyncadd [#allocation6], %s36
      %s39 = sshll.u32 [#allocation5], 4
      %s40 = int_to_ptr.vmem [resolvable:$true] %s39
      %42 = dma.hbm_to_vmem [thread:$0]  %s4, 16, %s40, [#allocation6]
    $region21: #{tpu_custom_call.1} parent=1 // pred_fallthru
      _
    // Predicated region
    $region22: #{tpu_custom_call.1} parent=1 // pred_check
      _
    $region23: #{tpu_custom_call.1} parent=1 // pred_check_branch
      %44 = sbr.rel (0) target = $region25
    $region24: #{tpu_custom_call.1} parent=1 // pred_region
      _
    $region25: #{tpu_custom_call.1} parent=1 // pred_fallthru
      _
    // Predicated region
    $region26: #{tpu_custom_call.1} parent=1 // pred_check
      _
    $region27: #{tpu_custom_call.1} parent=1 // pred_check_branch
      %46 = sbr.rel (0) target = $region29
    $region28: #{tpu_custom_call.1} parent=1 // pred_region
      _
    $region29: #{tpu_custom_call.1} parent=1 // pred_fallthru
      _
    // Predicated region
    $region30: #{tpu_custom_call.1} parent=1 // pred_check
      _
    $region31: #{tpu_custom_call.1} parent=1 // pred_check_branch
      %48 = sbr.rel (0) target = $region33
    $region32: #{tpu_custom_call.1} parent=1 // pred_region
      _
    $region33: #{tpu_custom_call.1} parent=1 // pred_fallthru
      _
    // Predicated region
    $region34: #{tpu_custom_call.1} parent=1 // pred_check
      _
    $region35: #{tpu_custom_call.1} parent=1 // pred_check_branch
      %50 = sbr.rel (0) target = $region37
    $region36: #{tpu_custom_call.1} parent=1 // pred_region
      _
    $region37: #{tpu_custom_call.1} parent=1 // pred_fallthru
      _
    // Predicated region
    $region38: #{tpu_custom_call.1} parent=1 // pred_check
      _
    $region39: #{tpu_custom_call.1} parent=1 // pred_check_branch
      %52 = sbr.rel (0) target = $region41
    $region40: #{tpu_custom_call.1} parent=1 // pred_region
      %53 = dma.done [#allocation3], 64
    $region41: #{tpu_custom_call.1} parent=1 // pred_fallthru
      _
    // Predicated region
    $region42: #{tpu_custom_call.1} parent=1 // pred_check
      _
    $region43: #{tpu_custom_call.1} parent=1 // pred_check_branch
      %55 = sbr.rel (0) target = $region45
    $region44: #{tpu_custom_call.1} parent=1 // pred_region
      %56 = dma.done [#allocation6], 16
    $region45: #{tpu_custom_call.1} parent=1 // pred_fallthru
      _
    %v58 = vld [vmem:[%s0] sm:$0xff]
    %v59 = vpack.c.bf16 %v58, %v58
    %v60 = vld [vmem:[#allocation2] sm:$0xf]
    %v61 = vld [vmem:[%s2] sm:$0x1]
    %v63 = vlaneseq
    %v64 = vshrl.u32 %v63, 7
    %v65 = vsub.s32 0, %v64
    %v66 = vrot.slane %v61, %v65
    %vm68 = vcmask 64512
    %v70 = vsel %vm68, %v59, 0
    %vm72 = vcmask 1043456
    %v74 = vsel %vm72, %v60, 0
    %76 = vmatprep.subr.bf16.mxu0 0
    %77 = vmatpush1.bf16.msra.mxu0 0
    %78 = vmatprep.subr.bf16.mxu0 0
    %79 = vmatpush1.bf16.msra.mxu0 0
    %80 = vmatprep.subr.bf16.mxu0 0
    %81 = vmatpush1.bf16.msra.mxu0 0
    %82 = vmatprep.subr.bf16.mxu0 0
    %83 = vmatpush1.bf16.msra.mxu0 0
    %84 = vmatprep.subr.bf16.mxu0 0
    %85 = vmatpush1.bf16.msra.mxu0 0
    %86 = vmatprep.subr.bf16.mxu0 0
    %87 = vmatpush1.bf16.msra.mxu0 0
    %88 = vmatprep.subr.bf16.mxu0 0
    %89 = vmatpush1.bf16.msra.mxu0 0
    %90 = vmatprep.subr.bf16.mxu0 0
    %91 = vmatpush1.bf16.msra.mxu0 %v74
    %92 = vmatprep.subr.bf16.mxu0 0
    %93 = vmatpush2.bf16.msra.mxu0 0
    %94 = vmatprep.subr.bf16.mxu0 0
    %95 = vmatpush2.bf16.msra.mxu0 0
    %96 = vmatprep.subr.bf16.mxu0 0
    %97 = vmatpush2.bf16.msra.mxu0 0
    %98 = vmatprep.subr.bf16.mxu0 0
    %99 = vmatpush2.bf16.msra.mxu0 0
    %100 = vmatprep.subr.bf16.mxu0 0
    %101 = vmatpush2.bf16.msra.mxu0 0
    %102 = vmatprep.subr.bf16.mxu0 0
    %103 = vmatpush2.bf16.msra.mxu0 0
    %104 = vmatprep.subr.bf16.mxu0 0
    %105 = vmatpush2.bf16.msra.mxu0 0
    %106 = vmatprep.subr.bf16.mxu0 0
    %107 = vmatpush2.bf16.msra.mxu0 0
    %108 = vmatprep.mubr.bf16.mxu0 0
    %109 = vmatmul.mubr.bf16.gmra.mxu0 %v70
    %v110 = vpop.f32.mrf.mxu0
    %v111 = vadd.f32 %v66, %v110
    %v112 = vpop.f32.mrf.mxu0
    %v113 = vpop.f32.mrf.mxu0
    %v114 = vpop.f32.mrf.mxu0
    %115 = vdwg.mxu0
    %v116 = vtanh.pop %v111
    %v117 = vpack.c.bf16 %v116, %v116
    %v118 = vld [vmem:[%s3] sm:$0xf]
    %v119 = vld [vmem:[%s3 + $0x4] sm:$0xf]
    %v120 = vld [vmem:[%s3 + $0x8] sm:$0xf]
    %v121 = vld [vmem:[%s3 + $0xc] sm:$0xf]
    %v122 = vld [vmem:[%s3 + $0x10] sm:$0xf]
    %v123 = vld [vmem:[%s3 + $0x14] sm:$0xf]
    %v124 = vld [vmem:[%s3 + $0x18] sm:$0xf]
    %v125 = vld [vmem:[%s3 + $0x1c] sm:$0xf]
    %v126 = vld [vmem:[%s3 + $0x20] sm:$0xf]
    %v127 = vld [vmem:[%s3 + $0x24] sm:$0xf]
    %v128 = vld [vmem:[%s3 + $0x28] sm:$0xf]
    %v129 = vld [vmem:[%s3 + $0x2c] sm:$0xf]
    %v130 = vld [vmem:[%s3 + $0x30] sm:$0xf]
    %v131 = vld [vmem:[%s3 + $0x34] sm:$0xf]
    %v132 = vld [vmem:[%s3 + $0x38] sm:$0xf]
    %v133 = vld [vmem:[%s3 + $0x3c] sm:$0xf]
    %v134 = vld [vmem:[#allocation5] sm:$0x1]
    %v136 = vlaneseq
    %v137 = vshrl.u32 %v136, 7
    %v138 = vsub.s32 0, %v137
    %v139 = vrot.slane %v134, %v138
    %v157 = vunpack.c.l.b16 %v118
    %v158 = vunpack.c.l.b16 %v119
    %v159 = vunpack.c.l.b16 %v120
    %v160 = vunpack.c.l.b16 %v121
    %v161 = vunpack.c.l.b16 %v122
    %v162 = vunpack.c.l.b16 %v123
    %v163 = vunpack.c.l.b16 %v124
    %v164 = vunpack.c.l.b16 %v125
    %v165 = vunpack.c.l.b16 %v126
    %v166 = vunpack.c.l.b16 %v127
    %v167 = vunpack.c.l.b16 %v128
    %v168 = vunpack.c.l.b16 %v129
    %v169 = vunpack.c.l.b16 %v130
    %v170 = vunpack.c.l.b16 %v131
    %v171 = vunpack.c.l.b16 %v132
    %v172 = vunpack.c.l.b16 %v133
    %v173 = vpack.c.b16 %v158, %v157
    %v174 = vpack.c.b16 %v160, %v159
    %v175 = vpack.c.b16 %v162, %v161
    %v176 = vpack.c.b16 %v164, %v163
    %v177 = vpack.c.b16 %v166, %v165
    %v178 = vpack.c.b16 %v168, %v167
    %v179 = vpack.c.b16 %v170, %v169
    %v180 = vpack.c.b16 %v172, %v171
    %189 = vmatprep.subr.bf16.mxu0 0
    %190 = vmatpush1.bf16.msra.mxu0 %v180
    %191 = vmatprep.subr.bf16.mxu0 0
    %192 = vmatpush1.bf16.msra.mxu0 %v179
    %193 = vmatprep.subr.bf16.mxu0 0
    %194 = vmatpush1.bf16.msra.mxu0 %v178
    %195 = vmatprep.subr.bf16.mxu0 0
    %196 = vmatpush1.bf16.msra.mxu0 %v177
    %197 = vmatprep.subr.bf16.mxu0 0
    %198 = vmatpush1.bf16.msra.mxu0 %v176
    %199 = vmatprep.subr.bf16.mxu0 0
    %200 = vmatpush1.bf16.msra.mxu0 %v175
    %201 = vmatprep.subr.bf16.mxu0 0
    %202 = vmatpush1.bf16.msra.mxu0 %v174
    %203 = vmatprep.subr.bf16.mxu0 0
    %204 = vmatpush1.bf16.msra.mxu0 %v173
    %205 = vmatprep.subr.bf16.mxu0 0
    %206 = vmatpush2.bf16.msra.mxu0 0
    %207 = vmatprep.subr.bf16.mxu0 0
    %208 = vmatpush2.bf16.msra.mxu0 0
    %209 = vmatprep.subr.bf16.mxu0 0
    %210 = vmatpush2.bf16.msra.mxu0 0
    %211 = vmatprep.subr.bf16.mxu0 0
    %212 = vmatpush2.bf16.msra.mxu0 0
    %213 = vmatprep.subr.bf16.mxu0 0
    %214 = vmatpush2.bf16.msra.mxu0 0
    %215 = vmatprep.subr.bf16.mxu0 0
    %216 = vmatpush2.bf16.msra.mxu0 0
    %217 = vmatprep.subr.bf16.mxu0 0
    %218 = vmatpush2.bf16.msra.mxu0 0
    %219 = vmatprep.subr.bf16.mxu0 0
    %220 = vmatpush2.bf16.msra.mxu0 0
    %221 = vmatprep.mubr.bf16.mxu0 0
    %222 = vmatmul.mubr.bf16.gmra.mxu0 %v117
    %v223 = vpop.f32.mrf.mxu0
    %v224 = vadd.f32 %v139, %v223
    %v225 = vpop.f32.mrf.mxu0
    %v226 = vpop.f32.mrf.mxu0
    %v227 = vpop.f32.mrf.mxu0
    %228 = vdwg.mxu0
    %v229 = vtanh.pop %v224
    %v230 = vmul.f32 %v229, %v229
    %v231 = vsub.f32 1.0, %v230
    %v232 = vld [vmem:[%s6] sm:$0x1]
    %v234 = vlaneseq
    %v235 = vshrl.u32 %v234, 7
    %v236 = vsub.s32 0, %v235
    %v237 = vrot.slane %v232, %v236
    %v239 = vmul.f32 %v231, %v237
    %v240 = vmul.f32 %v116, %v116
    %v241 = vsub.f32 1.0, %v240
    %v242 = vpack.c.bf16 %v239, %v239
    %v243 = vld [vmem:[%s5] sm:$0xf]
    %v244 = vld [vmem:[%s5 + $0x4] sm:$0xf]
    %v245 = vld [vmem:[%s5 + $0x8] sm:$0xf]
    %v246 = vld [vmem:[%s5 + $0xc] sm:$0xf]
    %v247 = vld [vmem:[%s5 + $0x10] sm:$0xf]
    %v248 = vld [vmem:[%s5 + $0x14] sm:$0xf]
    %v249 = vld [vmem:[%s5 + $0x18] sm:$0xf]
    %v250 = vld [vmem:[%s5 + $0x1c] sm:$0xf]
    %v251 = vld [vmem:[%s5 + $0x20] sm:$0xf]
    %v252 = vld [vmem:[%s5 + $0x24] sm:$0xf]
    %v253 = vld [vmem:[%s5 + $0x28] sm:$0xf]
    %v254 = vld [vmem:[%s5 + $0x2c] sm:$0xf]
    %v255 = vld [vmem:[%s5 + $0x30] sm:$0xf]
    %v256 = vld [vmem:[%s5 + $0x34] sm:$0xf]
    %v257 = vld [vmem:[%s5 + $0x38] sm:$0xf]
    %v258 = vld [vmem:[%s5 + $0x3c] sm:$0xf]
    %v275 = vunpack.c.l.b16 %v243
    %v276 = vunpack.c.l.b16 %v244
    %v277 = vunpack.c.l.b16 %v245
    %v278 = vunpack.c.l.b16 %v246
    %v279 = vunpack.c.l.b16 %v247
    %v280 = vunpack.c.l.b16 %v248
    %v281 = vunpack.c.l.b16 %v249
    %v282 = vunpack.c.l.b16 %v250
    %v283 = vunpack.c.l.b16 %v251
    %v284 = vunpack.c.l.b16 %v252
    %v285 = vunpack.c.l.b16 %v253
    %v286 = vunpack.c.l.b16 %v254
    %v287 = vunpack.c.l.b16 %v255
    %v288 = vunpack.c.l.b16 %v256
    %v289 = vunpack.c.l.b16 %v257
    %v290 = vunpack.c.l.b16 %v258
    %v291 = vpack.c.b16 %v276, %v275
    %v292 = vpack.c.b16 %v278, %v277
    %v293 = vpack.c.b16 %v280, %v279
    %v294 = vpack.c.b16 %v282, %v281
    %v295 = vpack.c.b16 %v284, %v283
    %v296 = vpack.c.b16 %v286, %v285
    %v297 = vpack.c.b16 %v288, %v287
    %v298 = vpack.c.b16 %v290, %v289
    %307 = vmatprep.subr.bf16.mxu0 0
    %308 = vmatpush1.bf16.msra.mxu0 %v298
    %309 = vmatprep.subr.bf16.mxu0 0
    %310 = vmatpush1.bf16.msra.mxu0 %v297
    %311 = vmatprep.subr.bf16.mxu0 0
    %312 = vmatpush1.bf16.msra.mxu0 %v296
    %313 = vmatprep.subr.bf16.mxu0 0
    %314 = vmatpush1.bf16.msra.mxu0 %v295
    %315 = vmatprep.subr.bf16.mxu0 0
    %316 = vmatpush1.bf16.msra.mxu0 %v294
    %317 = vmatprep.subr.bf16.mxu0 0
    %318 = vmatpush1.bf16.msra.mxu0 %v293
    %319 = vmatprep.subr.bf16.mxu0 0
    %320 = vmatpush1.bf16.msra.mxu0 %v292
    %321 = vmatprep.subr.bf16.mxu0 0
    %322 = vmatpush1.bf16.msra.mxu0 %v291
    %323 = vmatprep.subr.bf16.mxu0 0
    %324 = vmatpush2.bf16.msra.mxu0 0
    %325 = vmatprep.subr.bf16.mxu0 0
    %326 = vmatpush2.bf16.msra.mxu0 0
    %327 = vmatprep.subr.bf16.mxu0 0
    %328 = vmatpush2.bf16.msra.mxu0 0
    %329 = vmatprep.subr.bf16.mxu0 0
    %330 = vmatpush2.bf16.msra.mxu0 0
    %331 = vmatprep.subr.bf16.mxu0 0
    %332 = vmatpush2.bf16.msra.mxu0 0
    %333 = vmatprep.subr.bf16.mxu0 0
    %334 = vmatpush2.bf16.msra.mxu0 0
    %335 = vmatprep.subr.bf16.mxu0 0
    %336 = vmatpush2.bf16.msra.mxu0 0
    %337 = vmatprep.subr.bf16.mxu0 0
    %338 = vmatpush2.bf16.msra.mxu0 0
    %339 = vmatprep.mubr.bf16.mxu0 0
    %340 = vmatmul.mubr.bf16.gmra.mxu0 %v242
    %v341 = vpop.f32.mrf.mxu0
    %v342 = vadd.f32 0.0, %v341
    %v343 = vpop.f32.mrf.mxu0
    %v344 = vpop.f32.mrf.mxu0
    %v345 = vpop.f32.mrf.mxu0
    %346 = vdwg.mxu0
    %v347 = vmul.f32 %v241, %v342
    %v348 = vpack.c.bf16 %v229, %v229
    %v349 = vld [vmem:[%s8] sm:$0xf]
    %v350 = vld [vmem:[%s8 + $0x4] sm:$0xf]
    %v351 = vld [vmem:[%s8 + $0x8] sm:$0xf]
    %v352 = vld [vmem:[%s8 + $0xc] sm:$0xf]
    %v353 = vld [vmem:[%s8 + $0x10] sm:$0xf]
    %v354 = vld [vmem:[%s8 + $0x14] sm:$0xf]
    %v355 = vld [vmem:[%s8 + $0x18] sm:$0xf]
    %v356 = vld [vmem:[%s8 + $0x1c] sm:$0xf]
    %v357 = vld [vmem:[%s8 + $0x20] sm:$0xf]
    %v358 = vld [vmem:[%s8 + $0x24] sm:$0xf]
    %v359 = vld [vmem:[%s8 + $0x28] sm:$0xf]
    %v360 = vld [vmem:[%s8 + $0x2c] sm:$0xf]
    %v361 = vld [vmem:[%s8 + $0x30] sm:$0xf]
    %v362 = vld [vmem:[%s8 + $0x34] sm:$0xf]
    %v363 = vld [vmem:[%s8 + $0x38] sm:$0xf]
    %v364 = vld [vmem:[%s8 + $0x3c] sm:$0xf]
    %v365 = vpack.c.bf16 %v347, %v347
    %v366 = vld [vmem:[%s7] sm:$0xf]
    %v367 = vld [vmem:[%s7 + $0x4] sm:$0xf]
    %v368 = vld [vmem:[%s7 + $0x8] sm:$0xf]
    %v369 = vld [vmem:[%s7 + $0xc] sm:$0xf]
    %v370 = vld [vmem:[%s7 + $0x10] sm:$0xf]
    %v371 = vld [vmem:[%s7 + $0x14] sm:$0xf]
    %v372 = vld [vmem:[%s7 + $0x18] sm:$0xf]
    %v373 = vld [vmem:[%s7 + $0x1c] sm:$0xf]
    %v374 = vld [vmem:[%s7 + $0x20] sm:$0xf]
    %v375 = vld [vmem:[%s7 + $0x24] sm:$0xf]
    %v376 = vld [vmem:[%s7 + $0x28] sm:$0xf]
    %v377 = vld [vmem:[%s7 + $0x2c] sm:$0xf]
    %v378 = vld [vmem:[%s7 + $0x30] sm:$0xf]
    %v379 = vld [vmem:[%s7 + $0x34] sm:$0xf]
    %v380 = vld [vmem:[%s7 + $0x38] sm:$0xf]
    %v381 = vld [vmem:[%s7 + $0x3c] sm:$0xf]
    %v398 = vunpack.c.l.b16 %v366
    %v399 = vunpack.c.l.b16 %v367
    %v400 = vunpack.c.l.b16 %v368
    %v401 = vunpack.c.l.b16 %v369
    %v402 = vunpack.c.l.b16 %v370
    %v403 = vunpack.c.l.b16 %v371
    %v404 = vunpack.c.l.b16 %v372
    %v405 = vunpack.c.l.b16 %v373
    %v406 = vunpack.c.l.b16 %v374
    %v407 = vunpack.c.l.b16 %v375
    %v408 = vunpack.c.l.b16 %v376
    %v409 = vunpack.c.l.b16 %v377
    %v410 = vunpack.c.l.b16 %v378
    %v411 = vunpack.c.l.b16 %v379
    %v412 = vunpack.c.l.b16 %v380
    %v413 = vunpack.c.l.b16 %v381
    %v414 = vpack.c.b16 %v399, %v398
    %v415 = vpack.c.b16 %v401, %v400
    %v416 = vpack.c.b16 %v403, %v402
    %v417 = vpack.c.b16 %v405, %v404
    %v418 = vpack.c.b16 %v407, %v406
    %v419 = vpack.c.b16 %v409, %v408
    %v420 = vpack.c.b16 %v411, %v410
    %v421 = vpack.c.b16 %v413, %v412
    %430 = vmatprep.subr.bf16.mxu0 0
    %431 = vmatpush1.bf16.msra.mxu0 %v421
    %432 = vmatprep.subr.bf16.mxu0 0
    %433 = vmatpush1.bf16.msra.mxu0 %v420
    %434 = vmatprep.subr.bf16.mxu0 0
    %435 = vmatpush1.bf16.msra.mxu0 %v419
    %436 = vmatprep.subr.bf16.mxu0 0
    %437 = vmatpush1.bf16.msra.mxu0 %v418
    %438 = vmatprep.subr.bf16.mxu0 0
    %439 = vmatpush1.bf16.msra.mxu0 %v417
    %440 = vmatprep.subr.bf16.mxu0 0
    %441 = vmatpush1.bf16.msra.mxu0 %v416
    %442 = vmatprep.subr.bf16.mxu0 0
    %443 = vmatpush1.bf16.msra.mxu0 %v415
    %444 = vmatprep.subr.bf16.mxu0 0
    %445 = vmatpush1.bf16.msra.mxu0 %v414
    %446 = vmatprep.subr.bf16.mxu0 0
    %447 = vmatpush2.bf16.msra.mxu0 0
    %448 = vmatprep.subr.bf16.mxu0 0
    %449 = vmatpush2.bf16.msra.mxu0 0
    %450 = vmatprep.subr.bf16.mxu0 0
    %451 = vmatpush2.bf16.msra.mxu0 0
    %452 = vmatprep.subr.bf16.mxu0 0
    %453 = vmatpush2.bf16.msra.mxu0 0
    %454 = vmatprep.subr.bf16.mxu0 0
    %455 = vmatpush2.bf16.msra.mxu0 0
    %456 = vmatprep.subr.bf16.mxu0 0
    %457 = vmatpush2.bf16.msra.mxu0 0
    %458 = vmatprep.subr.bf16.mxu0 0
    %459 = vmatpush2.bf16.msra.mxu0 0
    %460 = vmatprep.subr.bf16.mxu0 0
    %461 = vmatpush2.bf16.msra.mxu0 0
    %462 = vmatprep.mubr.bf16.mxu0 0
    %463 = vmatmul.mubr.bf16.gmra.mxu0 %v365
    %v464 = vpop.f32.mrf.mxu0
    %v465 = vadd.f32 0.0, %v464
    %v466 = vpop.f32.mrf.mxu0
    %v467 = vpop.f32.mrf.mxu0
    %v468 = vpop.f32.mrf.mxu0
    %469 = vdwg.mxu0
    %v486 = vunpack.c.l.b16 %v349
    %v487 = vunpack.c.l.b16 %v350
    %v488 = vunpack.c.l.b16 %v351
    %v489 = vunpack.c.l.b16 %v352
    %v490 = vunpack.c.l.b16 %v353
    %v491 = vunpack.c.l.b16 %v354
    %v492 = vunpack.c.l.b16 %v355
    %v493 = vunpack.c.l.b16 %v356
    %v494 = vunpack.c.l.b16 %v357
    %v495 = vunpack.c.l.b16 %v358
    %v496 = vunpack.c.l.b16 %v359
    %v497 = vunpack.c.l.b16 %v360
    %v498 = vunpack.c.l.b16 %v361
    %v499 = vunpack.c.l.b16 %v362
    %v500 = vunpack.c.l.b16 %v363
    %v501 = vunpack.c.l.b16 %v364
    %v502 = vpack.c.b16 %v487, %v486
    %v503 = vpack.c.b16 %v489, %v488
    %v504 = vpack.c.b16 %v491, %v490
    %v505 = vpack.c.b16 %v493, %v492
    %v506 = vpack.c.b16 %v495, %v494
    %v507 = vpack.c.b16 %v497, %v496
    %v508 = vpack.c.b16 %v499, %v498
    %v509 = vpack.c.b16 %v501, %v500
    %518 = vmatprep.subr.bf16.mxu0 0
    %519 = vmatpush1.bf16.msra.mxu0 %v509
    %520 = vmatprep.subr.bf16.mxu0 0
    %521 = vmatpush1.bf16.msra.mxu0 %v508
    %522 = vmatprep.subr.bf16.mxu0 0
    %523 = vmatpush1.bf16.msra.mxu0 %v507
    %524 = vmatprep.subr.bf16.mxu0 0
    %525 = vmatpush1.bf16.msra.mxu0 %v506
    %526 = vmatprep.subr.bf16.mxu0 0
    %527 = vmatpush1.bf16.msra.mxu0 %v505
    %528 = vmatprep.subr.bf16.mxu0 0
    %529 = vmatpush1.bf16.msra.mxu0 %v504
    %530 = vmatprep.subr.bf16.mxu0 0
    %531 = vmatpush1.bf16.msra.mxu0 %v503
    %532 = vmatprep.subr.bf16.mxu0 0
    %533 = vmatpush1.bf16.msra.mxu0 %v502
    %534 = vmatprep.subr.bf16.mxu0 0
    %535 = vmatpush2.bf16.msra.mxu0 0
    %536 = vmatprep.subr.bf16.mxu0 0
    %537 = vmatpush2.bf16.msra.mxu0 0
    %538 = vmatprep.subr.bf16.mxu0 0
    %539 = vmatpush2.bf16.msra.mxu0 0
    %540 = vmatprep.subr.bf16.mxu0 0
    %541 = vmatpush2.bf16.msra.mxu0 0
    %542 = vmatprep.subr.bf16.mxu0 0
    %543 = vmatpush2.bf16.msra.mxu0 0
    %544 = vmatprep.subr.bf16.mxu0 0
    %545 = vmatpush2.bf16.msra.mxu0 0
    %546 = vmatprep.subr.bf16.mxu0 0
    %547 = vmatpush2.bf16.msra.mxu0 0
    %548 = vmatprep.subr.bf16.mxu0 0
    %549 = vmatpush2.bf16.msra.mxu0 0
    %550 = vmatprep.mubr.bf16.mxu0 0
    %551 = vmatmul.mubr.bf16.gmra.mxu0 %v348
    %v552 = vpop.f32.mrf.mxu0
    %v553 = vadd.f32 %v465, %v552
    %v554 = vpop.f32.mrf.mxu0
    %v555 = vpop.f32.mrf.mxu0
    %v556 = vpop.f32.mrf.mxu0
    %557 = vdwg.mxu0
    %558 = vst.msk [vmem:[#allocation7] sm:$0xff] %vm68, %v553
    // Predicated region
    $region46: #{tpu_custom_call.1} parent=1 // pred_check
      _
    $region47: #{tpu_custom_call.1} parent=1 // pred_check_branch
      %560 = sbr.rel (0) target = $region49
    $region48: #{tpu_custom_call.1} parent=1 // pred_region
      %s562 = ssub.s32 128, 128
      %563 = vsyncadd [#allocation4], %s562
      %s565 = sshll.u32 [#allocation7], 4
      %s566 = int_to_ptr.vmem [resolvable:$true] %s565
      %568 = dma.vmem_to_hbm [thread:$0]  %s566, 128, %s9, [#allocation4]
    $region49: #{tpu_custom_call.1} parent=1 // pred_fallthru
      _
    // Predicated region
    $region50: #{tpu_custom_call.1} parent=1 // pred_check
      _
    $region51: #{tpu_custom_call.1} parent=1 // pred_check_branch
      %570 = sbr.rel (0) target = $region53
    $region52: #{tpu_custom_call.1} parent=1 // pred_region
      %571 = dma.done [#allocation4], 128
    $region53: #{tpu_custom_call.1} parent=1 // pred_fallthru
      _
    %572 = vsyncpa [#allocation3], 1
    %573 = vsyncpa [#allocation6], 1
    %574 = vsyncpa [#allocation4], 1

</llo_original>
